<compile_context>
chip_gen: v7x
topology: tpu7x:2x2x1
jax: 0.10.0
libtpu: 0.0.40
codegen_flags: <defaults>
</compile_context>

<pallas_src>
import numpy as np
import jax
import jax.numpy as jnp
from jax import lax
from jax.experimental import pallas as pl
from jax.experimental.pallas import tpu as pltpu

LANE = 128
SUBLANE = 8
MAX_BATCH_TILE = 512


def _round_up(x, m):
    return ((x + m - 1) // m) * m


# ----------------------------- fused Pallas kernel ---------------------------

def _make_fused_kernel(n_cols, n_hidden, r_pad, row_offs):
    """Whole forward pass in one kernel.

    Ref order: x_idx, table_fused(bf16), b1(f32),
               [W_l(bf16), b_l(f32)] for l = 2..n_hidden,
               W_final(bf16), b_final(f32), out(f32).
    All padded columns are exact zeros through every layer.
    """
    n_mid = n_hidden - 1  # hidden layers after the first (which is fused with the table)

    def kernel(xidx_ref, table_ref, b1_ref, *rest):
        layer_refs = rest[: 2 * n_mid]
        wf_ref = rest[2 * n_mid]
        bf_ref = rest[2 * n_mid + 1]
        out_ref = rest[2 * n_mid + 2]

        B = xidx_ref.shape[0]
        idx = xidx_ref[...]                                        # [B, C] int32
        iota_r = lax.broadcasted_iota(jnp.int32, (B, r_pad), 1)    # [B, R_pad]

        # one-hot gather+concat fused with the first Linear: onehot @ (table @ W1)
        # per-column row offsets are static Python ints (folded into the compare)
        onehot = (iota_r == (idx[:, 0:1] + row_offs[0])).astype(jnp.bfloat16)
        for j in range(1, n_cols):                                 # unrolled (tiny, static)
            onehot = onehot + (iota_r == (idx[:, j:j + 1] + row_offs[j])).astype(jnp.bfloat16)

        # TODO(synk): embedding/hidden Dropout are identity in eval mode; training-mode
        # dropout and BN batch statistics are not implemented.

        x = jnp.dot(onehot, table_ref[...], preferred_element_type=jnp.float32) + b1_ref[...]
        x = jnp.maximum(x, 0.0)

        # remaining hidden layers (previous BN affine already folded into W/b at pack time)
        for l in range(n_mid):
            w_ref, b_ref = layer_refs[2 * l], layer_refs[2 * l + 1]
            x = jnp.dot(x.astype(jnp.bfloat16), w_ref[...],
                        preferred_element_type=jnp.float32) + b_ref[...]
            x = jnp.maximum(x, 0.0)

        # final Linear (last BN affine folded in); lane-dense 128-wide store
        out_ref[...] = jnp.dot(x.astype(jnp.bfloat16), wf_ref[...],
                               preferred_element_type=jnp.float32) + bf_ref[...]

    return kernel


# ------------------------------ Model parameters -----------------------------

def init_params(key, embedding_size, output_size, layers):
    """Logical (unpadded) parameters, matching the PyTorch module layout."""
    params = {"embeddings": [], "hidden": [], "final": None}
    num_embeddings = sum(nf for _, nf in embedding_size)

    for (ni, nf) in embedding_size:
        key, k = jax.random.split(key)
        params["embeddings"].append(jax.random.normal(k, (ni, nf), jnp.float32))

    in_size = num_embeddings
    eps = 1e-5
    for layer in layers:
        key, kw, kb, kg, kbeta, km, kv = jax.random.split(key, 7)
        w = jax.random.normal(kw, (in_size, layer), jnp.float32) * 0.1   # [in, out]
        b = jax.random.normal(kb, (layer,), jnp.float32) * 0.1
        gamma = 1.0 + 0.1 * jax.random.normal(kg, (layer,), jnp.float32)
        beta = 0.1 * jax.random.normal(kbeta, (layer,), jnp.float32)
        running_mean = 0.1 * jax.random.normal(km, (layer,), jnp.float32)
        running_var = 1.0 + 0.1 * jax.random.uniform(kv, (layer,), jnp.float32)
        # fold eval-mode BatchNorm1d into a post-ReLU affine
        scale = gamma / jnp.sqrt(running_var + eps)
        shift = beta - running_mean * scale
        params["hidden"].append((w, b, scale, shift))
        in_size = layer

    key, kw, kb = jax.random.split(key, 3)
    wf = jax.random.normal(kw, (in_size, output_size), jnp.float32) * 0.1
    bf = jax.random.normal(kb, (output_size,), jnp.float32) * 0.1
    params["final"] = (wf, bf)
    return params


def pack_params(params, embedding_size):
    """Host-side, one-time packing.

    * builds the combined embedding table and pre-multiplies it by W1
      (table_fused = table @ W1), zero-padded to [R_pad, H1_pad] bf16;
    * folds every eval-mode BN affine into the next Linear's weight/bias;
    * zero-pads every weight/bias to lane-dense 128-wide shapes;
    * weights in bf16, biases in f32 (added to the f32 accumulator in-kernel).
    """
    ni_list = [ni for ni, _ in embedding_size]
    nf_list = [nf for _, nf in embedding_size]
    n_cols = len(embedding_size)

    R = sum(ni_list)
    R_pad = max(_round_up(R, 16), 16)            # bf16 sublane-pack friendly
    F_in = sum(nf_list)

    # combined (unpadded) table: table j occupies rows [r_j, +ni_j), cols [c_j, +nf_j)
    table = jnp.zeros((R, F_in), jnp.float32)
    row_offs = []
    r, c = 0, 0
    for (ni, nf), emb in zip(embedding_size, params["embeddings"]):
        table = table.at[r:r + ni, c:c + nf].set(emb)
        row_offs.append(r)
        r += ni
        c += nf

    hidden = params["hidden"]
    n_hidden = len(hidden)

    # first hidden layer: fuse table @ W1 (f32 on host), then pad + cast to bf16
    w1, b1, scale1, shift1 = hidden[0]
    h1 = w1.shape[1]
    h1_pad = max(_round_up(h1, LANE), LANE)
    table_fused = jnp.zeros((R_pad, h1_pad), jnp.float32).at[:R, :h1].set(table @ w1)
    b1_p = jnp.zeros((1, h1_pad), jnp.float32).at[:, :h1].set(b1)

    # remaining hidden layers: fold previous layer's BN scale/shift into W/b
    fused_hidden = []
    prev_scale, prev_shift = scale1, shift1
    in_pad = h1_pad
    for (w, b, scale, shift) in hidden[1:]:
        in_f, out_f = w.shape
        out_pad = max(_round_up(out_f, LANE), LANE)
        w_f = prev_scale[:, None] * w            # diag(scale_prev) @ W
        b_f = b + prev_shift @ w                 # b + shift_prev @ W
        wp = jnp.zeros((in_pad, out_pad), jnp.float32).at[:in_f, :out_f].set(w_f)
        bp = jnp.zeros((1, out_pad), jnp.float32).at[:, :out_f].set(b_f)
        fused_hidden.append((wp.astype(jnp.bfloat16), bp))
        prev_scale, prev_shift = scale, shift
        in_pad = out_pad

    # final Linear: fold last hidden layer's BN affine
    wf, bf = params["final"]
    in_f, out_f = wf.shape
    out_pad = max(_round_up(out_f, LANE), LANE)
    wf_f = prev_scale[:, None] * wf
    bf_f = bf + prev_shift @ wf
    wfp = jnp.zeros((in_pad, out_pad), jnp.float32).at[:in_f, :out_f].set(wf_f)
    bfp = jnp.zeros((1, out_pad), jnp.float32).at[:, :out_f].set(bf_f)

    return {
        "n_cols": n_cols,
        "n_hidden": n_hidden,
        "row_offs": tuple(int(v) for v in row_offs),     # static Python constants
        "table_fused": table_fused.astype(jnp.bfloat16),  # [R_pad, H1_pad]
        "b1": b1_p,
        "hidden": fused_hidden,                           # [(W bf16, b f32)] * (n_hidden-1)
        "final": (wfp.astype(jnp.bfloat16), bfp),
        "output_size": out_f,
    }


# -------------------------------- forward pass --------------------------------

def model_forward(packed, x_categorical):
    B = x_categorical.shape[0]
    n_cols = packed["n_cols"]
    n_hidden = packed["n_hidden"]

    # batch tiling: lane-dense tiles, capped so weights + 2 tiles stay tiny in VMEM
    B_pad = max(_round_up(B, SUBLANE), SUBLANE)
    tile_b = min(B_pad, MAX_BATCH_TILE)
    B_pad = _round_up(B_pad, tile_b)
    n_tiles = B_pad // tile_b

    x_idx = x_categorical.astype(jnp.int32)
    if B_pad != B:
        x_idx = jnp.zeros((B_pad, n_cols), jnp.int32).at[:B, :].set(x_idx)

    table = packed["table_fused"]
    r_pad = table.shape[0]
    out_pad = packed["final"][0].shape[1]

    def _const_spec(arr):
        # weights/biases: full-array block, VMEM-resident across batch tiles
        return pl.BlockSpec(arr.shape, lambda i: (0,) * arr.ndim)

    inputs = [x_idx, table, packed["b1"]]
    in_specs = [
        pl.BlockSpec((tile_b, n_cols), lambda i: (i, 0)),
        _const_spec(table),
        _const_spec(packed["b1"]),
    ]
    for (wp, bp) in packed["hidden"]:
        inputs += [wp, bp]
        in_specs += [_const_spec(wp), _const_spec(bp)]
    wfp, bfp = packed["final"]
    inputs += [wfp, bfp]
    in_specs += [_const_spec(wfp), _const_spec(bfp)]

    kernel = _make_fused_kernel(n_cols, n_hidden, r_pad, packed["row_offs"])

    out_padded = pl.pallas_call(
        kernel,
        out_shape=jax.ShapeDtypeStruct((B_pad, out_pad), jnp.float32),
        grid=(n_tiles,),
        in_specs=in_specs,
        out_specs=pl.BlockSpec((tile_b, out_pad), lambda i: (i, 0)),
        compiler_params=pltpu.CompilerParams(dimension_semantics=("parallel",)),
    )(*inputs)

    return out_padded[:B, :packed["output_size"]]


def model_forward_ref(params, x_categorical):
    """Pure-JAX f32 reference matching the PyTorch module (eval mode)."""
    embs = [jnp.take(t, x_categorical[:, i], axis=0)
            for i, t in enumerate(params["embeddings"])]
    x = jnp.concatenate(embs, axis=1)
    for (w, b, scale, shift) in params["hidden"]:
        x = jnp.maximum(x @ w + b, 0.0) * scale + shift
    wf, bf = params["final"]
    return x @ wf + bf


# ------------------------------------ main ------------------------------------

if __name__ == "__main__":
    # Small synthetic config consistent with the module's constructor.
    embedding_size = [(10, 4), (8, 6), (6, 6)]   # sum(nf) = 16
    layers = [32, 16]
    output_size = 2
    batch = 8

    key = jax.random.PRNGKey(0)
    key, kp, kx = jax.random.split(key, 3)
    params = init_params(kp, embedding_size, output_size, layers)
    packed = pack_params(params, embedding_size)

    # categorical inputs: one column per embedding table, each within [0, ni)
    cols = []
    for (ni, _) in embedding_size:
        kx, kc = jax.random.split(kx)
        cols.append(jax.random.randint(kc, (batch, 1), 0, ni, dtype=jnp.int32))
    x_categorical = jnp.concatenate(cols, axis=1)   # [batch, n_features] = [8, 3]

    out = model_forward(packed, x_categorical)
    out = jax.block_until_ready(out)

    ref = model_forward_ref(params, x_categorical)
    # bf16 weights/table -> relax tolerance vs the f32 reference
    np.testing.assert_allclose(np.asarray(out), np.asarray(ref), rtol=2e-2, atol=2e-2)

    print("KERNEL_OK")
</pallas_src>

<mosaic_0001>
module attributes {stable_mosaic.version = 11 : i64} {
  func.func @kernel(%arg0: i32, %arg1: memref<8x3xi32, #tpu.memory_space<vmem>>, %arg2: memref<32x128xbf16, #tpu.memory_space<vmem>>, %arg3: memref<1x128xf32, #tpu.memory_space<vmem>>, %arg4: memref<128x128xbf16, #tpu.memory_space<vmem>>, %arg5: memref<1x128xf32, #tpu.memory_space<vmem>>, %arg6: memref<128x128xbf16, #tpu.memory_space<vmem>>, %arg7: memref<1x128xf32, #tpu.memory_space<vmem>>, %arg8: memref<8x128xf32, #tpu.memory_space<vmem>>) attributes {dimension_semantics = [#tpu.dimension_semantics<parallel>], iteration_bounds = array<i64: 1>, scalar_prefetch = 0 : i64, scratch_operands = 0 : i64, tpu.core_type = #tpu.core_type<tc>, window_params = [{transform_indices = @transform_0, window_bounds = array<i64: 8, 3>}, {pipeline_mode = #tpu.pipeline_mode<synchronous>, transform_indices = @transform_1, window_bounds = array<i64: 32, 128>}, {pipeline_mode = #tpu.pipeline_mode<synchronous>, transform_indices = @transform_2, window_bounds = array<i64: 1, 128>}, {pipeline_mode = #tpu.pipeline_mode<synchronous>, transform_indices = @transform_3, window_bounds = array<i64: 128, 128>}, {pipeline_mode = #tpu.pipeline_mode<synchronous>, transform_indices = @transform_4, window_bounds = array<i64: 1, 128>}, {pipeline_mode = #tpu.pipeline_mode<synchronous>, transform_indices = @transform_5, window_bounds = array<i64: 128, 128>}, {pipeline_mode = #tpu.pipeline_mode<synchronous>, transform_indices = @transform_6, window_bounds = array<i64: 1, 128>}, {transform_indices = @transform_7, window_bounds = array<i64: 8, 128>}]} {
    %c0 = arith.constant 0 : index
    %c0_0 = arith.constant 0 : index
    %0 = vector.load %arg1[%c0, %c0_0] : memref<8x3xi32, #tpu.memory_space<vmem>>, vector<8x3xi32>
    %1 = tpu.iota {dimensions = array<i32: 1>} : vector<8x32xi32>
    %2 = vector.extract_strided_slice %0 {offsets = [0, 0], sizes = [8, 1], strides = [1, 1]} : vector<8x3xi32> to vector<8x1xi32>
    %c0_i32 = arith.constant 0 : i32
    %3 = vector.broadcast %c0_i32 : i32 to vector<8x1xi32>
    %4 = arith.addi %2, %3 : vector<8x1xi32>
    %5 = vector.broadcast %4 : vector<8x1xi32> to vector<8x32xi32>
    %6 = arith.cmpi eq, %1, %5 : vector<8x32xi32>
    %7 = arith.extui %6 : vector<8x32xi1> to vector<8x32xi32>
    %8 = arith.sitofp %7 : vector<8x32xi32> to vector<8x32xf32>
    %9 = arith.truncf %8 : vector<8x32xf32> to vector<8x32xbf16>
    %10 = vector.extract_strided_slice %0 {offsets = [0, 1], sizes = [8, 1], strides = [1, 1]} : vector<8x3xi32> to vector<8x1xi32>
    %c10_i32 = arith.constant 10 : i32
    %11 = vector.broadcast %c10_i32 : i32 to vector<8x1xi32>
    %12 = arith.addi %10, %11 : vector<8x1xi32>
    %13 = vector.broadcast %12 : vector<8x1xi32> to vector<8x32xi32>
    %14 = arith.cmpi eq, %1, %13 : vector<8x32xi32>
    %15 = arith.extui %14 : vector<8x32xi1> to vector<8x32xi32>
    %16 = arith.sitofp %15 : vector<8x32xi32> to vector<8x32xf32>
    %17 = arith.truncf %16 : vector<8x32xf32> to vector<8x32xbf16>
    %18 = arith.addf %9, %17 : vector<8x32xbf16>
    %19 = vector.extract_strided_slice %0 {offsets = [0, 2], sizes = [8, 1], strides = [1, 1]} : vector<8x3xi32> to vector<8x1xi32>
    %c18_i32 = arith.constant 18 : i32
    %20 = vector.broadcast %c18_i32 : i32 to vector<8x1xi32>
    %21 = arith.addi %19, %20 : vector<8x1xi32>
    %22 = vector.broadcast %21 : vector<8x1xi32> to vector<8x32xi32>
    %23 = arith.cmpi eq, %1, %22 : vector<8x32xi32>
    %24 = arith.extui %23 : vector<8x32xi1> to vector<8x32xi32>
    %25 = arith.sitofp %24 : vector<8x32xi32> to vector<8x32xf32>
    %26 = arith.truncf %25 : vector<8x32xf32> to vector<8x32xbf16>
    %27 = arith.addf %18, %26 : vector<8x32xbf16>
    %c0_1 = arith.constant 0 : index
    %c0_2 = arith.constant 0 : index
    %28 = vector.load %arg2[%c0_1, %c0_2] : memref<32x128xbf16, #tpu.memory_space<vmem>>, vector<32x128xbf16>
    %cst = arith.constant dense<0.000000e+00> : vector<8x128xf32>
    %29 = tpu.matmul %27, %28, %cst {dimension_numbers = #tpu.dot_dimension_numbers<[1], [0], [0], [1], [0, 0, 1, 1], [], []>} : vector<8x32xbf16>, vector<32x128xbf16>, vector<8x128xf32> -> vector<8x128xf32>
    %c0_3 = arith.constant 0 : index
    %c0_4 = arith.constant 0 : index
    %30 = vector.load %arg3[%c0_3, %c0_4] : memref<1x128xf32, #tpu.memory_space<vmem>>, vector<1x128xf32>
    %31 = vector.broadcast %30 : vector<1x128xf32> to vector<8x128xf32>
    %32 = arith.addf %29, %31 : vector<8x128xf32>
    %cst_5 = arith.constant 0.000000e+00 : f32
    %33 = vector.broadcast %cst_5 : f32 to vector<8x128xf32>
    %34 = arith.maximumf %32, %33 : vector<8x128xf32>
    %35 = arith.truncf %34 : vector<8x128xf32> to vector<8x128xbf16>
    %c0_6 = arith.constant 0 : index
    %c0_7 = arith.constant 0 : index
    %36 = vector.load %arg4[%c0_6, %c0_7] : memref<128x128xbf16, #tpu.memory_space<vmem>>, vector<128x128xbf16>
    %cst_8 = arith.constant dense<0.000000e+00> : vector<8x128xf32>
    %37 = tpu.matmul %35, %36, %cst_8 {dimension_numbers = #tpu.dot_dimension_numbers<[1], [0], [0], [1], [0, 0, 1, 1], [], []>} : vector<8x128xbf16>, vector<128x128xbf16>, vector<8x128xf32> -> vector<8x128xf32>
    %c0_9 = arith.constant 0 : index
    %c0_10 = arith.constant 0 : index
    %38 = vector.load %arg5[%c0_9, %c0_10] : memref<1x128xf32, #tpu.memory_space<vmem>>, vector<1x128xf32>
    %39 = vector.broadcast %38 : vector<1x128xf32> to vector<8x128xf32>
    %40 = arith.addf %37, %39 : vector<8x128xf32>
    %cst_11 = arith.constant 0.000000e+00 : f32
    %41 = vector.broadcast %cst_11 : f32 to vector<8x128xf32>
    %42 = arith.maximumf %40, %41 : vector<8x128xf32>
    %43 = arith.truncf %42 : vector<8x128xf32> to vector<8x128xbf16>
    %c0_12 = arith.constant 0 : index
    %c0_13 = arith.constant 0 : index
    %44 = vector.load %arg6[%c0_12, %c0_13] : memref<128x128xbf16, #tpu.memory_space<vmem>>, vector<128x128xbf16>
    %cst_14 = arith.constant dense<0.000000e+00> : vector<8x128xf32>
    %45 = tpu.matmul %43, %44, %cst_14 {dimension_numbers = #tpu.dot_dimension_numbers<[1], [0], [0], [1], [0, 0, 1, 1], [], []>} : vector<8x128xbf16>, vector<128x128xbf16>, vector<8x128xf32> -> vector<8x128xf32>
    %c0_15 = arith.constant 0 : index
    %c0_16 = arith.constant 0 : index
    %46 = vector.load %arg7[%c0_15, %c0_16] : memref<1x128xf32, #tpu.memory_space<vmem>>, vector<1x128xf32>
    %47 = vector.broadcast %46 : vector<1x128xf32> to vector<8x128xf32>
    %48 = arith.addf %45, %47 : vector<8x128xf32>
    %c0_17 = arith.constant 0 : index
    %c0_18 = arith.constant 0 : index
    %49 = vector.load %arg8[%c0_17, %c0_18] : memref<8x128xf32, #tpu.memory_space<vmem>>, vector<8x128xf32>
    tpu.vector_store %arg8[%c0_17, %c0_18], %48 {strides = array<i32>} : memref<8x128xf32, #tpu.memory_space<vmem>>, vector<8x128xf32>,
    return
  }
  func.func @transform_0(%arg0: i32) -> (i32, i32) {
    %c0_i32 = arith.constant 0 : i32
    %c0_i32_0 = arith.constant 0 : i32
    return %arg0, %c0_i32 : i32, i32
  }
  func.func @transform_1(%arg0: i32) -> (i32, i32) {
    %c0_i32 = arith.constant 0 : i32
    %c0_i32_0 = arith.constant 0 : i32
    %c0_i32_1 = arith.constant 0 : i32
    return %c0_i32, %c0_i32_0 : i32, i32
  }
  func.func @transform_2(%arg0: i32) -> (i32, i32) {
    %c0_i32 = arith.constant 0 : i32
    %c0_i32_0 = arith.constant 0 : i32
    %c0_i32_1 = arith.constant 0 : i32
    return %c0_i32, %c0_i32_0 : i32, i32
  }
  func.func @transform_3(%arg0: i32) -> (i32, i32) {
    %c0_i32 = arith.constant 0 : i32
    %c0_i32_0 = arith.constant 0 : i32
    %c0_i32_1 = arith.constant 0 : i32
    return %c0_i32, %c0_i32_0 : i32, i32
  }
  func.func @transform_4(%arg0: i32) -> (i32, i32) {
    %c0_i32 = arith.constant 0 : i32
    %c0_i32_0 = arith.constant 0 : i32
    %c0_i32_1 = arith.constant 0 : i32
    return %c0_i32, %c0_i32_0 : i32, i32
  }
  func.func @transform_5(%arg0: i32) -> (i32, i32) {
    %c0_i32 = arith.constant 0 : i32
    %c0_i32_0 = arith.constant 0 : i32
    %c0_i32_1 = arith.constant 0 : i32
    return %c0_i32, %c0_i32_0 : i32, i32
  }
  func.func @transform_6(%arg0: i32) -> (i32, i32) {
    %c0_i32 = arith.constant 0 : i32
    %c0_i32_0 = arith.constant 0 : i32
    %c0_i32_1 = arith.constant 0 : i32
    return %c0_i32, %c0_i32_0 : i32, i32
  }
  func.func @transform_7(%arg0: i32) -> (i32, i32) {
    %c0_i32 = arith.constant 0 : i32
    %c0_i32_0 = arith.constant 0 : i32
    return %arg0, %c0_i32 : i32, i32
  }
}

</mosaic_0001>

<llo_original>
// kernel: tpu_custom_call.1
$region0: #{tpu_custom_call.1}
  #allocation0 [shape = 'u32[]', space=smem, size = 0x4, offset = 0x4, fixed_abs, tag = 'smem constant byte address 0x4 - core index']
  #allocation1 [shape = 'u32[144,128]{1,0:T(1,128)}', space=vmem, size = 0x12000, scoped, tag = 'internal scratch']
  %s0 = inlined_call_operand.vmem [shape: s32[8,3], index: 0, kind: input, shape index: {}]
  %s1 = inlined_call_operand.hbm [shape: bf16[32,128], index: 1, kind: input, shape index: {}]
  %s2 = inlined_call_operand.vmem [shape: f32[1,128], index: 2, kind: input, shape index: {}]
  %s3 = inlined_call_operand.hbm [shape: bf16[128,128], index: 3, kind: input, shape index: {}]
  %s4 = inlined_call_operand.vmem [shape: f32[1,128], index: 4, kind: input, shape index: {}]
  %s5 = inlined_call_operand.hbm [shape: bf16[128,128], index: 5, kind: input, shape index: {}]
  %s6 = inlined_call_operand.vmem [shape: f32[1,128], index: 6, kind: input, shape index: {}]
  %s7 = inlined_call_operand.hbm [shape: f32[8,128], index: 7, kind: output, shape index: {}]
  %s8 = sld [smem:[#allocation0]]
  $region50: #{tpu_custom_call.1} parent=0
    _
  %s10 = ssub.s32 1, %s8
  %s11 = scalar_select 0, %s10, %s8
  $region1: #{tpu_custom_call.1} parent=0
    #allocation2 [shape = 'u8[8192]{0}', space=vmem, size = 0x2000, scoped, tag = 'input window, operand 1, single buffered']
    #allocation3 [shape = 's32[1]{0}', space=sflag, size = 0x4, scoped, tag = 'scoped memory for tpu_custom_call.1']
    #allocation4 [shape = 's32[1]{0}', space=sflag, size = 0x4, scoped, tag = 'scoped memory for tpu_custom_call.1']
    #allocation5 [shape = 'u8[32768]{0}', space=vmem, size = 0x8000, scoped, tag = 'input window, operand 3, single buffered']
    #allocation6 [shape = 's32[1]{0}', space=sflag, size = 0x4, scoped, tag = 'scoped memory for tpu_custom_call.1']
    #allocation7 [shape = 'u8[32768]{0}', space=vmem, size = 0x8000, scoped, tag = 'input window, operand 5, single buffered']
    #allocation8 [shape = 'u8[4096]{0}', space=vmem, size = 0x1000, scoped, tag = 'output window, operand 0, single buffered']
    %12 = vsyncpa [#allocation3], 0
    %13 = vsyncpa [#allocation6], 0
    %14 = vsyncpa [#allocation4], 0
    // Predicated region
    $region2: #{tpu_custom_call.1} parent=1 // pred_check
      _
    $region3: #{tpu_custom_call.1} parent=1 // pred_check_branch
      %16 = sbr.rel (0) target = $region5
    $region4: #{tpu_custom_call.1} parent=1 // pred_region
      _
    $region5: #{tpu_custom_call.1} parent=1 // pred_fallthru
      _
    // Predicated region
    $region6: #{tpu_custom_call.1} parent=1 // pred_check
      _
    $region7: #{tpu_custom_call.1} parent=1 // pred_check_branch
      %18 = sbr.rel (0) target = $region9
    $region8: #{tpu_custom_call.1} parent=1 // pred_region
      %s20 = ssub.s32 256, 256
      %21 = vsyncadd [#allocation3], %s20
      %s22 = sshll.u32 [#allocation2], 4
      %s23 = int_to_ptr.vmem [resolvable:$true] %s22
      %28 = dma.hbm_to_vmem [thread:$0]  %s1, 256, %s23, [#allocation3], 64, 64, 4
    $region9: #{tpu_custom_call.1} parent=1 // pred_fallthru
      _
    // Predicated region
    $region10: #{tpu_custom_call.1} parent=1 // pred_check
      _
    $region11: #{tpu_custom_call.1} parent=1 // pred_check_branch
      %30 = sbr.rel (0) target = $region13
    $region12: #{tpu_custom_call.1} parent=1 // pred_region
      _
    $region13: #{tpu_custom_call.1} parent=1 // pred_fallthru
      _
    // Predicated region
    $region14: #{tpu_custom_call.1} parent=1 // pred_check
      _
    $region15: #{tpu_custom_call.1} parent=1 // pred_check_branch
      %32 = sbr.rel (0) target = $region17
    $region16: #{tpu_custom_call.1} parent=1 // pred_region
      %s34 = ssub.s32 1024, 1024
      %35 = vsyncadd [#allocation6], %s34
      %s36 = sshll.u32 [#allocation5], 4
      %s37 = int_to_ptr.vmem [resolvable:$true] %s36
      %42 = dma.hbm_to_vmem [thread:$0]  %s3, 1024, %s37, [#allocation6], 64, 64, 4
    $region17: #{tpu_custom_call.1} parent=1 // pred_fallthru
      _
    // Predicated region
    $region18: #{tpu_custom_call.1} parent=1 // pred_check
      _
    $region19: #{tpu_custom_call.1} parent=1 // pred_check_branch
      %44 = sbr.rel (0) target = $region21
    $region20: #{tpu_custom_call.1} parent=1 // pred_region
      _
    $region21: #{tpu_custom_call.1} parent=1 // pred_fallthru
      _
    // Predicated region
    $region22: #{tpu_custom_call.1} parent=1 // pred_check
      _
    $region23: #{tpu_custom_call.1} parent=1 // pred_check_branch
      %46 = sbr.rel (0) target = $region25
    $region24: #{tpu_custom_call.1} parent=1 // pred_region
      %s48 = ssub.s32 1024, 1024
      %49 = vsyncadd [#allocation6], %s48
      %s50 = sshll.u32 [#allocation7], 4
      %s51 = int_to_ptr.vmem [resolvable:$true] %s50
      %56 = dma.hbm_to_vmem [thread:$0]  %s5, 1024, %s51, [#allocation6], 64, 64, 4
    $region25: #{tpu_custom_call.1} parent=1 // pred_fallthru
      _
    // Predicated region
    $region26: #{tpu_custom_call.1} parent=1 // pred_check
      _
    $region27: #{tpu_custom_call.1} parent=1 // pred_check_branch
      %58 = sbr.rel (0) target = $region29
    $region28: #{tpu_custom_call.1} parent=1 // pred_region
      _
    $region29: #{tpu_custom_call.1} parent=1 // pred_fallthru
      _
    // Predicated region
    $region30: #{tpu_custom_call.1} parent=1 // pred_check
      _
    $region31: #{tpu_custom_call.1} parent=1 // pred_check_branch
      %60 = sbr.rel (0) target = $region33
    $region32: #{tpu_custom_call.1} parent=1 // pred_region
      %61 = dma.done [#allocation3], 256
    $region33: #{tpu_custom_call.1} parent=1 // pred_fallthru
      _
    // Predicated region
    $region34: #{tpu_custom_call.1} parent=1 // pred_check
      _
    $region35: #{tpu_custom_call.1} parent=1 // pred_check_branch
      %63 = sbr.rel (0) target = $region37
    $region36: #{tpu_custom_call.1} parent=1 // pred_region
      %64 = dma.done [#allocation6], 1024
    $region37: #{tpu_custom_call.1} parent=1 // pred_fallthru
      _
    // Predicated region
    $region38: #{tpu_custom_call.1} parent=1 // pred_check
      _
    $region39: #{tpu_custom_call.1} parent=1 // pred_check_branch
      %66 = sbr.rel (0) target = $region41
    $region40: #{tpu_custom_call.1} parent=1 // pred_region
      %67 = dma.done [#allocation6], 1024
    $region41: #{tpu_custom_call.1} parent=1 // pred_fallthru
      _
    %v69 = vld [vmem:[%s0] sm:$0xff]
    %v70 = vlaneseq
    %v71 = vand.u32 %v70, 127
    %72 = vset.pattern.permute.xlu0 0
    %73 = vperm.xlu0 %72, %v69
    %v74 = vpop.permute.xlu0 %73
    %vm75 = vcmp.eq.s32.totalorder %v71, %v74
    %v76 = vsel %vm75, 1, 0
    %v77 = vcvt.s32.f32 %v76
    %v78 = vpack.c.bf16 %v77, %v77
    %v79 = vadd.s32 %v69, 10
    %80 = vset.pattern.permute.xlu0 1
    %81 = vperm.xlu0 %80, %v79
    %v82 = vpop.permute.xlu0 %81
    %vm83 = vcmp.eq.s32.totalorder %v71, %v82
    %v84 = vsel %vm83, 1, 0
    %v85 = vcvt.s32.f32 %v84
    %v86 = vpack.c.bf16 %v85, %v85
    %v87 = vadd.bf16 %v78, %v86
    %v88 = vadd.s32 %v69, 18
    %89 = vset.pattern.permute.xlu0 2
    %90 = vperm.xlu0 %89, %v88
    %v91 = vpop.permute.xlu0 %90
    %vm92 = vcmp.eq.s32.totalorder %v71, %v91
    %v93 = vsel %vm92, 1, 0
    %v94 = vcvt.s32.f32 %v93
    %v95 = vpack.c.bf16 %v94, %v94
    %v96 = vadd.bf16 %v87, %v95
    %v97 = vld [vmem:[#allocation2] sm:$0xf]
    %v98 = vld [vmem:[#allocation2 + $0x4] sm:$0xf]
    %v99 = vld [vmem:[#allocation2 + $0x8] sm:$0xf]
    %v100 = vld [vmem:[#allocation2 + $0xc] sm:$0xf]
    %v101 = vld [vmem:[%s2] sm:$0x1]
    %v103 = vlaneseq
    %v104 = vshrl.u32 %v103, 7
    %v105 = vsub.s32 0, %v104
    %v106 = vrot.slane %v101, %v105
    %v112 = vunpack.c.l.b16 %v97
    %v113 = vunpack.c.l.b16 %v98
    %v114 = vunpack.c.l.b16 %v99
    %v115 = vunpack.c.l.b16 %v100
    %v116 = vpack.c.b16 %v113, %v112
    %v117 = vpack.c.b16 %v115, %v114
    %vm120 = vcmask 261120
    %v122 = vsel %vm120, %v96, 0
    %124 = vmatprep.subr.bf16.mxu0 0
    %125 = vmatpush1.bf16.msra.mxu0 %v116
    %126 = vmatprep.subr.bf16.mxu0 0
    %127 = vmatpush1.bf16.msra.mxu0 %v117
    %128 = vmatprep.subr.bf16.mxu0 0
    %129 = vmatpush1.bf16.msra.mxu0 0
    %130 = vmatprep.subr.bf16.mxu0 0
    %131 = vmatpush1.bf16.msra.mxu0 0
    %132 = vmatprep.subr.bf16.mxu0 0
    %133 = vmatpush1.bf16.msra.mxu0 0
    %134 = vmatprep.subr.bf16.mxu0 0
    %135 = vmatpush1.bf16.msra.mxu0 0
    %136 = vmatprep.subr.bf16.mxu0 0
    %137 = vmatpush1.bf16.msra.mxu0 0
    %138 = vmatprep.subr.bf16.mxu0 0
    %139 = vmatpush1.bf16.msra.mxu0 0
    %140 = vmatprep.subr.bf16.mxu0 0
    %141 = vmatpush1.bf16.msra.mxu0 0
    %142 = vmatprep.subr.bf16.mxu0 0
    %143 = vmatpush1.bf16.msra.mxu0 0
    %144 = vmatprep.subr.bf16.mxu0 0
    %145 = vmatpush1.bf16.msra.mxu0 0
    %146 = vmatprep.subr.bf16.mxu0 0
    %147 = vmatpush1.bf16.msra.mxu0 0
    %148 = vmatprep.subr.bf16.mxu0 0
    %149 = vmatpush1.bf16.msra.mxu0 0
    %150 = vmatprep.subr.bf16.mxu0 0
    %151 = vmatpush1.bf16.msra.mxu0 0
    %152 = vmatprep.subr.bf16.mxu0 0
    %153 = vmatpush1.bf16.msra.mxu0 0
    %154 = vmatprep.subr.bf16.mxu0 0
    %155 = vmatpush1.bf16.msra.mxu0 0
    %156 = vmatprep.mubr.bf16.mxu0 0
    %157 = vmatmul.mubr.bf16.gmra.mrb[0].mxu0 %v122
    %v158 = vpop.f32.mrb[0].mxu0
    %v159 = vadd.f32 %v106, %v158
    %v160 = vpop.f32.mrb[0].mxu0
    %v161 = vpop.f32.mrb[0].mxu0
    %v162 = vpop.f32.mrb[0].mxu0
    %163 = vdwg.mxu0
    %v164 = vmax.f32 %v159, 0.0
    %v165 = vpack.c.bf16 %v164, %v164
    %v166 = vld [vmem:[#allocation5] sm:$0xf]
    %v167 = vld [vmem:[#allocation5 + $0x4] sm:$0xf]
    %v168 = vld [vmem:[#allocation5 + $0x8] sm:$0xf]
    %v169 = vld [vmem:[#allocation5 + $0xc] sm:$0xf]
    %v170 = vld [vmem:[#allocation5 + $0x10] sm:$0xf]
    %v171 = vld [vmem:[#allocation5 + $0x14] sm:$0xf]
    %v172 = vld [vmem:[#allocation5 + $0x18] sm:$0xf]
    %v173 = vld [vmem:[#allocation5 + $0x1c] sm:$0xf]
    %v174 = vld [vmem:[#allocation5 + $0x20] sm:$0xf]
    %v175 = vld [vmem:[#allocation5 + $0x24] sm:$0xf]
    %v176 = vld [vmem:[#allocation5 + $0x28] sm:$0xf]
    %v177 = vld [vmem:[#allocation5 + $0x2c] sm:$0xf]
    %v178 = vld [vmem:[#allocation5 + $0x30] sm:$0xf]
    %v179 = vld [vmem:[#allocation5 + $0x34] sm:$0xf]
    %v180 = vld [vmem:[#allocation5 + $0x38] sm:$0xf]
    %v181 = vld [vmem:[#allocation5 + $0x3c] sm:$0xf]
    %v182 = vld [vmem:[%s4] sm:$0x1]
    %v184 = vlaneseq
    %v185 = vshrl.u32 %v184, 7
    %v186 = vsub.s32 0, %v185
    %v187 = vrot.slane %v182, %v186
    %v205 = vunpack.c.l.b16 %v166
    %v206 = vunpack.c.l.b16 %v167
    %v207 = vunpack.c.l.b16 %v168
    %v208 = vunpack.c.l.b16 %v169
    %v209 = vunpack.c.l.b16 %v170
    %v210 = vunpack.c.l.b16 %v171
    %v211 = vunpack.c.l.b16 %v172
    %v212 = vunpack.c.l.b16 %v173
    %v213 = vunpack.c.l.b16 %v174
    %v214 = vunpack.c.l.b16 %v175
    %v215 = vunpack.c.l.b16 %v176
    %v216 = vunpack.c.l.b16 %v177
    %v217 = vunpack.c.l.b16 %v178
    %v218 = vunpack.c.l.b16 %v179
    %v219 = vunpack.c.l.b16 %v180
    %v220 = vunpack.c.l.b16 %v181
    %v221 = vpack.c.b16 %v206, %v205
    %v222 = vpack.c.b16 %v208, %v207
    %v223 = vpack.c.b16 %v210, %v209
    %v224 = vpack.c.b16 %v212, %v211
    %v225 = vpack.c.b16 %v214, %v213
    %v226 = vpack.c.b16 %v216, %v215
    %v227 = vpack.c.b16 %v218, %v217
    %v228 = vpack.c.b16 %v220, %v219
    %237 = vmatprep.subr.bf16.mxu0 0
    %238 = vmatpush1.bf16.msra.mxu0 %v221
    %239 = vmatprep.subr.bf16.mxu0 0
    %240 = vmatpush1.bf16.msra.mxu0 %v222
    %241 = vmatprep.subr.bf16.mxu0 0
    %242 = vmatpush1.bf16.msra.mxu0 %v223
    %243 = vmatprep.subr.bf16.mxu0 0
    %244 = vmatpush1.bf16.msra.mxu0 %v224
    %245 = vmatprep.subr.bf16.mxu0 0
    %246 = vmatpush1.bf16.msra.mxu0 %v225
    %247 = vmatprep.subr.bf16.mxu0 0
    %248 = vmatpush1.bf16.msra.mxu0 %v226
    %249 = vmatprep.subr.bf16.mxu0 0
    %250 = vmatpush1.bf16.msra.mxu0 %v227
    %251 = vmatprep.subr.bf16.mxu0 0
    %252 = vmatpush1.bf16.msra.mxu0 %v228
    %253 = vmatprep.subr.bf16.mxu0 0
    %254 = vmatpush1.bf16.msra.mxu0 0
    %255 = vmatprep.subr.bf16.mxu0 0
    %256 = vmatpush1.bf16.msra.mxu0 0
    %257 = vmatprep.subr.bf16.mxu0 0
    %258 = vmatpush1.bf16.msra.mxu0 0
    %259 = vmatprep.subr.bf16.mxu0 0
    %260 = vmatpush1.bf16.msra.mxu0 0
    %261 = vmatprep.subr.bf16.mxu0 0
    %262 = vmatpush1.bf16.msra.mxu0 0
    %263 = vmatprep.subr.bf16.mxu0 0
    %264 = vmatpush1.bf16.msra.mxu0 0
    %265 = vmatprep.subr.bf16.mxu0 0
    %266 = vmatpush1.bf16.msra.mxu0 0
    %267 = vmatprep.subr.bf16.mxu0 0
    %268 = vmatpush1.bf16.msra.mxu0 0
    %269 = vmatprep.mubr.bf16.mxu0 0
    %270 = vmatmul.mubr.bf16.gmra.mrb[0].mxu0 %v165
    %v271 = vpop.f32.mrb[0].mxu0
    %v272 = vadd.f32 %v187, %v271
    %v273 = vpop.f32.mrb[0].mxu0
    %v274 = vpop.f32.mrb[0].mxu0
    %v275 = vpop.f32.mrb[0].mxu0
    %276 = vdwg.mxu0
    %v277 = vmax.f32 %v272, 0.0
    %v278 = vpack.c.bf16 %v277, %v277
    %v279 = vld [vmem:[#allocation7] sm:$0xf]
    %v280 = vld [vmem:[#allocation7 + $0x4] sm:$0xf]
    %v281 = vld [vmem:[#allocation7 + $0x8] sm:$0xf]
    %v282 = vld [vmem:[#allocation7 + $0xc] sm:$0xf]
    %v283 = vld [vmem:[#allocation7 + $0x10] sm:$0xf]
    %v284 = vld [vmem:[#allocation7 + $0x14] sm:$0xf]
    %v285 = vld [vmem:[#allocation7 + $0x18] sm:$0xf]
    %v286 = vld [vmem:[#allocation7 + $0x1c] sm:$0xf]
    %v287 = vld [vmem:[#allocation7 + $0x20] sm:$0xf]
    %v288 = vld [vmem:[#allocation7 + $0x24] sm:$0xf]
    %v289 = vld [vmem:[#allocation7 + $0x28] sm:$0xf]
    %v290 = vld [vmem:[#allocation7 + $0x2c] sm:$0xf]
    %v291 = vld [vmem:[#allocation7 + $0x30] sm:$0xf]
    %v292 = vld [vmem:[#allocation7 + $0x34] sm:$0xf]
    %v293 = vld [vmem:[#allocation7 + $0x38] sm:$0xf]
    %v294 = vld [vmem:[#allocation7 + $0x3c] sm:$0xf]
    %v295 = vld [vmem:[%s6] sm:$0x1]
    %v297 = vlaneseq
    %v298 = vshrl.u32 %v297, 7
    %v299 = vsub.s32 0, %v298
    %v300 = vrot.slane %v295, %v299
    %v318 = vunpack.c.l.b16 %v279
    %v319 = vunpack.c.l.b16 %v280
    %v320 = vunpack.c.l.b16 %v281
    %v321 = vunpack.c.l.b16 %v282
    %v322 = vunpack.c.l.b16 %v283
    %v323 = vunpack.c.l.b16 %v284
    %v324 = vunpack.c.l.b16 %v285
    %v325 = vunpack.c.l.b16 %v286
    %v326 = vunpack.c.l.b16 %v287
    %v327 = vunpack.c.l.b16 %v288
    %v328 = vunpack.c.l.b16 %v289
    %v329 = vunpack.c.l.b16 %v290
    %v330 = vunpack.c.l.b16 %v291
    %v331 = vunpack.c.l.b16 %v292
    %v332 = vunpack.c.l.b16 %v293
    %v333 = vunpack.c.l.b16 %v294
    %v334 = vpack.c.b16 %v319, %v318
    %v335 = vpack.c.b16 %v321, %v320
    %v336 = vpack.c.b16 %v323, %v322
    %v337 = vpack.c.b16 %v325, %v324
    %v338 = vpack.c.b16 %v327, %v326
    %v339 = vpack.c.b16 %v329, %v328
    %v340 = vpack.c.b16 %v331, %v330
    %v341 = vpack.c.b16 %v333, %v332
    %350 = vmatprep.subr.bf16.mxu0 0
    %351 = vmatpush1.bf16.msra.mxu0 %v334
    %352 = vmatprep.subr.bf16.mxu0 0
    %353 = vmatpush1.bf16.msra.mxu0 %v335
    %354 = vmatprep.subr.bf16.mxu0 0
    %355 = vmatpush1.bf16.msra.mxu0 %v336
    %356 = vmatprep.subr.bf16.mxu0 0
    %357 = vmatpush1.bf16.msra.mxu0 %v337
    %358 = vmatprep.subr.bf16.mxu0 0
    %359 = vmatpush1.bf16.msra.mxu0 %v338
    %360 = vmatprep.subr.bf16.mxu0 0
    %361 = vmatpush1.bf16.msra.mxu0 %v339
    %362 = vmatprep.subr.bf16.mxu0 0
    %363 = vmatpush1.bf16.msra.mxu0 %v340
    %364 = vmatprep.subr.bf16.mxu0 0
    %365 = vmatpush1.bf16.msra.mxu0 %v341
    %366 = vmatprep.subr.bf16.mxu0 0
    %367 = vmatpush1.bf16.msra.mxu0 0
    %368 = vmatprep.subr.bf16.mxu0 0
    %369 = vmatpush1.bf16.msra.mxu0 0
    %370 = vmatprep.subr.bf16.mxu0 0
    %371 = vmatpush1.bf16.msra.mxu0 0
    %372 = vmatprep.subr.bf16.mxu0 0
    %373 = vmatpush1.bf16.msra.mxu0 0
    %374 = vmatprep.subr.bf16.mxu0 0
    %375 = vmatpush1.bf16.msra.mxu0 0
    %376 = vmatprep.subr.bf16.mxu0 0
    %377 = vmatpush1.bf16.msra.mxu0 0
    %378 = vmatprep.subr.bf16.mxu0 0
    %379 = vmatpush1.bf16.msra.mxu0 0
    %380 = vmatprep.subr.bf16.mxu0 0
    %381 = vmatpush1.bf16.msra.mxu0 0
    %382 = vmatprep.mubr.bf16.mxu0 0
    %383 = vmatmul.mubr.bf16.gmra.mrb[0].mxu0 %v278
    %v384 = vpop.f32.mrb[0].mxu0
    %v385 = vadd.f32 %v300, %v384
    %v386 = vpop.f32.mrb[0].mxu0
    %v387 = vpop.f32.mrb[0].mxu0
    %v388 = vpop.f32.mrb[0].mxu0
    %389 = vdwg.mxu0
    %390 = vst [vmem:[#allocation8] sm:$0xff] %v385
    // Predicated region
    $region42: #{tpu_custom_call.1} parent=1 // pred_check
      _
    $region43: #{tpu_custom_call.1} parent=1 // pred_check_branch
      %392 = sbr.rel (0) target = $region45
    $region44: #{tpu_custom_call.1} parent=1 // pred_region
      %s394 = ssub.s32 128, 128
      %395 = vsyncadd [#allocation4], %s394
      %s397 = sshll.u32 [#allocation8], 4
      %s398 = int_to_ptr.vmem [resolvable:$true] %s397
      %400 = dma.vmem_to_hbm [thread:$0]  %s398, 128, %s7, [#allocation4]
    $region45: #{tpu_custom_call.1} parent=1 // pred_fallthru
      _
    // Predicated region
    $region46: #{tpu_custom_call.1} parent=1 // pred_check
      _
    $region47: #{tpu_custom_call.1} parent=1 // pred_check_branch
      %402 = sbr.rel (0) target = $region49
    $region48: #{tpu_custom_call.1} parent=1 // pred_region
      %403 = dma.done [#allocation4], 128
    $region49: #{tpu_custom_call.1} parent=1 // pred_fallthru
      _
    %404 = vsyncpa [#allocation3], 1
    %405 = vsyncpa [#allocation6], 1
    %406 = vsyncpa [#allocation4], 1

</llo_original>
